<compile_context>
chip_gen: v7x
topology: tpu7x:2x2x1
jax: 0.10.0
libtpu: 0.0.40
codegen_flags: <defaults>
</compile_context>

<pallas_src>
import jax
import jax.numpy as jnp
import numpy as np
from jax import lax
from jax.experimental import pallas as pl
from jax.experimental.pallas import tpu as pltpu


def _make_kernel(H, W, Cin, Co):
    S = H * W
    H2, W2 = H - 2, W - 2

    def _taps_fwd(v):
        # v: (C, S) flat, row stride W.  Returns (9*C, S) where row t*C + ci
        # holds v[ci, p + dy*W + dx] (t = dy*3 + dx), zero-filled past the end.
        C = v.shape[0]
        ext = jnp.concatenate([v, jnp.zeros((C, 2 * W + 2), v.dtype)], axis=1)
        parts = [ext[:, dy * W + dx: dy * W + dx + S]
                 for dy in range(3) for dx in range(3)]
        return jnp.concatenate(parts, axis=0)

    def _taps_bwd(v):
        # Returns (9*C, S) where row t*C + ci holds v[ci, p - dy*W - dx],
        # zero-filled for negative flat indices.
        C = v.shape[0]
        off = 2 * W + 2
        ext = jnp.concatenate([jnp.zeros((C, off), v.dtype), v], axis=1)
        parts = [ext[:, off - (dy * W + dx): off - (dy * W + dx) + S]
                 for dy in range(3) for dx in range(3)]
        return jnp.concatenate(parts, axis=0)

    def _prelu(v, a):
        # v: (Co, S), a: (1, 1) scalar slope for the negative part.
        return jnp.maximum(v, 0.0) + a * jnp.minimum(v, 0.0)

    def kernel(x_ref, w1_ref, w2_ref, wd_ref, w3_ref, b_ref, a_ref, m_ref,
               out_ref):
        x = x_ref[0]                                  # (Cin, S)
        b = b_ref[...]                                # (4*Co, 1)  packed biases
        al = a_ref[...]                               # (4, 1)     PReLU slopes
        mask = m_ref[...]                             # (1, S)     L0 validity

        # conv_1: 1x1 conv + PReLU  -> x1, valid on all H x W positions.
        x1 = _prelu(jnp.dot(w1_ref[...], x, preferred_element_type=jnp.float32)
                    + b[0:Co, :], al[0:1, :])

        # conv_2: 3x3 valid conv + PReLU -> L_0_t (valid rows < H-2, cols < W-2).
        L0 = _prelu(jnp.dot(w2_ref[...], _taps_fwd(x1),
                            preferred_element_type=jnp.float32)
                    + b[Co:2 * Co, :], al[1:2, :])

        # Zero L_0_t outside its valid region so the transposed conv sees an
        # exactly zero-padded input (also neutralizes row-wrap tap reads).
        L0m = L0 * mask

        # deconv_1: 3x3 stride-1 transposed conv + PReLU -> H_0_t (full H x W).
        H0 = _prelu(jnp.dot(wd_ref[...], _taps_bwd(L0m),
                            preferred_element_type=jnp.float32)
                    + b[2 * Co:3 * Co, :], al[2:3, :])

        # conv_3 on (H_0_t - x1) + PReLU -> L_1_t.
        L1 = _prelu(jnp.dot(w3_ref[...], _taps_fwd(H0 - x1),
                            preferred_element_type=jnp.float32)
                    + b[3 * Co:4 * Co, :], al[3:4, :])

        res = L1 + L0                                 # valid rows<H-2, cols<W-2

        # Store a contiguous, lane-dense prefix (first H-2 flat rows, stride W);
        # the wrapper drops the last 2 columns of each row.
        out_ref[0] = res[:, :H2 * W].astype(out_ref.dtype)

    return kernel


def _tap_major(w):
    # (Co, Ci, 3, 3) -> (Co, 9*Ci) with column index (dy*3 + dx)*Ci + ci.
    Co, Ci, KH, KW = w.shape
    return jnp.transpose(w, (0, 2, 3, 1)).reshape(Co, KH * KW * Ci)


def d_downproj_forward(x_nchw, params):
    """x_nchw: (N, Cin, H, W) float32.  Returns (N, Co, H-2, W-2)."""
    N, Cin, H, W = x_nchw.shape
    Co = params["w1"].shape[0]
    H2, W2 = H - 2, W - 2
    S = H * W

    # --- parameter re-layout (tiny, outside the kernel) ---
    w1m = params["w1"].reshape(Co, Cin)                      # 1x1 conv weight
    w2m = _tap_major(params["w2"])                           # (Co, 9*Co)
    w3m = _tap_major(params["w3"])                           # (Co, 9*Co)
    # ConvTranspose2d weight is (in=Co, out=Co, 3, 3); the kernel consumes it as
    # wd_mat[co, (dy*3+dx)*Co + ci] = wd[ci, co, dy, dx] (no spatial flip: the
    # transposed conv is computed with backward tap shifts).
    wdm = jnp.transpose(params["wd"], (1, 2, 3, 0)).reshape(Co, 9 * Co)

    bpack = jnp.concatenate(
        [params["b1"], params["b2"], params["b3"], params["b4"]]
    ).reshape(4 * Co, 1).astype(jnp.float32)
    apack = jnp.stack(
        [params["a1"], params["a2"], params["a3"], params["a4"]]
    ).reshape(4, 1).astype(jnp.float32)

    # Validity mask of L_0_t on the flat (row-stride W) spatial buffer.
    m = np.zeros((H, W), np.float32)
    m[:H2, :W2] = 1.0
    mask = jnp.asarray(m.reshape(1, S))

    # NCHW -> channels-first flat spatial: free, contiguous reshape (no transpose).
    x_flat = x_nchw.reshape(N, Cin, S)

    kernel = _make_kernel(H, W, Cin, Co)

    out_flat = pl.pallas_call(
        kernel,
        out_shape=jax.ShapeDtypeStruct((N, Co, H2 * W), x_nchw.dtype),
        grid_spec=pltpu.PrefetchScalarGridSpec(
            num_scalar_prefetch=0,
            grid=(N,),
            in_specs=[
                pl.BlockSpec((1, Cin, S), lambda n: (n, 0, 0)),   # x
                pl.BlockSpec((Co, Cin), lambda n: (0, 0)),        # w1
                pl.BlockSpec((Co, 9 * Co), lambda n: (0, 0)),     # w2
                pl.BlockSpec((Co, 9 * Co), lambda n: (0, 0)),     # wd
                pl.BlockSpec((Co, 9 * Co), lambda n: (0, 0)),     # w3
                pl.BlockSpec((4 * Co, 1), lambda n: (0, 0)),      # biases
                pl.BlockSpec((4, 1), lambda n: (0, 0)),           # PReLU slopes
                pl.BlockSpec((1, S), lambda n: (0, 0)),           # L0 mask
            ],
            out_specs=pl.BlockSpec((1, Co, H2 * W), lambda n: (n, 0, 0)),
        ),
        compiler_params=pltpu.CompilerParams(
            dimension_semantics=("parallel",),
            vmem_limit_bytes=32 * 1024 * 1024),
    )(x_flat, w1m, w2m, wdm, w3m, bpack, apack, mask)

    # Drop the 2 right-hand columns kept only for contiguous lane-dense stores.
    return out_flat.reshape(N, Co, H2, W)[:, :, :, :W2]


def _reference(x, p):
    """Pure-JAX reference matching torch D_DownprojBlock (k=3, s=1, pad=0, PReLU)."""
    def prelu(v, a):
        return jnp.maximum(v, 0.0) + a * jnp.minimum(v, 0.0)

    def conv(v, w, b, padding):
        o = lax.conv_general_dilated(
            v, w, window_strides=(1, 1),
            padding=((padding, padding), (padding, padding)),
            dimension_numbers=("NCHW", "OIHW", "NCHW"))
        return o + b.reshape(1, -1, 1, 1)

    x1 = prelu(conv(x, p["w1"], p["b1"], 0), p["a1"])
    L0 = prelu(conv(x1, p["w2"], p["b2"], 0), p["a2"])
    # ConvTranspose2d(stride=1, pad=0) == conv with full padding using the
    # spatially flipped, in/out-transposed kernel.
    wd_eq = jnp.transpose(jnp.flip(p["wd"], (2, 3)), (1, 0, 2, 3))
    H0 = prelu(conv(L0, wd_eq, p["b3"], 2), p["a3"])
    L1 = prelu(conv(H0 - x1, p["w3"], p["b4"], 0), p["a4"])
    return L1 + L0


if __name__ == "__main__":
    key = jax.random.PRNGKey(0)
    ks = jax.random.split(key, 9)

    N, Cin, Co, H, W = 2, 4, 8, 16, 16   # kernel_size=3, stride=1, padding=0

    x = jax.random.normal(ks[0], (N, Cin, H, W), dtype=jnp.float32)
    params = dict(
        w1=0.3 * jax.random.normal(ks[1], (Co, Cin, 1, 1), jnp.float32),
        b1=0.1 * jax.random.normal(ks[2], (Co,), jnp.float32),
        w2=0.1 * jax.random.normal(ks[3], (Co, Co, 3, 3), jnp.float32),
        b2=0.1 * jax.random.normal(ks[4], (Co,), jnp.float32),
        wd=0.1 * jax.random.normal(ks[5], (Co, Co, 3, 3), jnp.float32),
        b3=0.1 * jax.random.normal(ks[6], (Co,), jnp.float32),
        w3=0.1 * jax.random.normal(ks[7], (Co, Co, 3, 3), jnp.float32),
        b4=0.1 * jax.random.normal(ks[8], (Co,), jnp.float32),
        a1=jnp.float32(0.2), a2=jnp.float32(0.25),
        a3=jnp.float32(0.2), a4=jnp.float32(0.15),
    )

    out = jax.block_until_ready(d_downproj_forward(x, params))
    ref = jax.block_until_ready(_reference(x, params))

    assert out.shape == (N, Co, H - 2, W - 2), out.shape
    np.testing.assert_allclose(np.asarray(out), np.asarray(ref),
                               rtol=1e-3, atol=1e-3)
    print("KERNEL_OK")
</pallas_src>

<mosaic_0001>
module attributes {stable_mosaic.version = 11 : i64} {
  func.func @kernel(%arg0: i32, %arg1: memref<1x4x256xf32, #tpu.memory_space<vmem>>, %arg2: memref<8x4xf32, #tpu.memory_space<vmem>>, %arg3: memref<8x72xf32, #tpu.memory_space<vmem>>, %arg4: memref<8x72xf32, #tpu.memory_space<vmem>>, %arg5: memref<8x72xf32, #tpu.memory_space<vmem>>, %arg6: memref<32x1xf32, #tpu.memory_space<vmem>>, %arg7: memref<4x1xf32, #tpu.memory_space<vmem>>, %arg8: memref<1x256xf32, #tpu.memory_space<vmem>>, %arg9: memref<1x8x224xf32, #tpu.memory_space<vmem>>) attributes {dimension_semantics = [#tpu.dimension_semantics<parallel>], iteration_bounds = array<i64: 2>, scalar_prefetch = 0 : i64, scratch_operands = 0 : i64, tpu.core_type = #tpu.core_type<tc>, window_params = [{transform_indices = @transform_0, window_bounds = array<i64: 1, 4, 256>}, {pipeline_mode = #tpu.pipeline_mode<synchronous>, transform_indices = @transform_1, window_bounds = array<i64: 8, 4>}, {pipeline_mode = #tpu.pipeline_mode<synchronous>, transform_indices = @transform_2, window_bounds = array<i64: 8, 72>}, {pipeline_mode = #tpu.pipeline_mode<synchronous>, transform_indices = @transform_3, window_bounds = array<i64: 8, 72>}, {pipeline_mode = #tpu.pipeline_mode<synchronous>, transform_indices = @transform_4, window_bounds = array<i64: 8, 72>}, {pipeline_mode = #tpu.pipeline_mode<synchronous>, transform_indices = @transform_5, window_bounds = array<i64: 32, 1>}, {pipeline_mode = #tpu.pipeline_mode<synchronous>, transform_indices = @transform_6, window_bounds = array<i64: 4, 1>}, {pipeline_mode = #tpu.pipeline_mode<synchronous>, transform_indices = @transform_7, window_bounds = array<i64: 1, 256>}, {transform_indices = @transform_8, window_bounds = array<i64: 1, 8, 224>}]} {
    %c0 = arith.constant 0 : index
    %c0_0 = arith.constant 0 : index
    %c0_1 = arith.constant 0 : index
    %0 = vector.load %arg1[%c0, %c0_0, %c0_1] : memref<1x4x256xf32, #tpu.memory_space<vmem>>, vector<1x4x256xf32>
    %1 = vector.shape_cast %0 : vector<1x4x256xf32> to vector<4x256xf32>
    %c0_2 = arith.constant 0 : index
    %c0_3 = arith.constant 0 : index
    %2 = vector.load %arg6[%c0_2, %c0_3] : memref<32x1xf32, #tpu.memory_space<vmem>>, vector<32x1xf32>
    %c0_4 = arith.constant 0 : index
    %c0_5 = arith.constant 0 : index
    %3 = vector.load %arg7[%c0_4, %c0_5] : memref<4x1xf32, #tpu.memory_space<vmem>>, vector<4x1xf32>
    %c0_6 = arith.constant 0 : index
    %c0_7 = arith.constant 0 : index
    %4 = vector.load %arg8[%c0_6, %c0_7] : memref<1x256xf32, #tpu.memory_space<vmem>>, vector<1x256xf32>
    %c0_8 = arith.constant 0 : index
    %c0_9 = arith.constant 0 : index
    %5 = vector.load %arg2[%c0_8, %c0_9] : memref<8x4xf32, #tpu.memory_space<vmem>>, vector<8x4xf32>
    %cst = arith.constant dense<0.000000e+00> : vector<8x256xf32>
    %6 = tpu.matmul %5, %1, %cst {dimension_numbers = #tpu.dot_dimension_numbers<[1], [0], [0], [1], [0, 0, 1, 1], [], []>} : vector<8x4xf32>, vector<4x256xf32>, vector<8x256xf32> -> vector<8x256xf32>
    %7 = vector.extract_strided_slice %2 {offsets = [0, 0], sizes = [8, 1], strides = [1, 1]} : vector<32x1xf32> to vector<8x1xf32>
    %8 = vector.broadcast %7 : vector<8x1xf32> to vector<8x256xf32>
    %9 = arith.addf %6, %8 : vector<8x256xf32>
    %10 = vector.extract_strided_slice %3 {offsets = [0, 0], sizes = [1, 1], strides = [1, 1]} : vector<4x1xf32> to vector<1x1xf32>
    %cst_10 = arith.constant 0.000000e+00 : f32
    %11 = vector.broadcast %cst_10 : f32 to vector<8x256xf32>
    %12 = arith.maximumf %9, %11 : vector<8x256xf32>
    %cst_11 = arith.constant 0.000000e+00 : f32
    %13 = vector.broadcast %cst_11 : f32 to vector<8x256xf32>
    %14 = arith.minimumf %9, %13 : vector<8x256xf32>
    %15 = vector.broadcast %10 : vector<1x1xf32> to vector<8x256xf32>
    %16 = arith.mulf %15, %14 : vector<8x256xf32>
    %17 = arith.addf %12, %16 : vector<8x256xf32>
    %c0_12 = arith.constant 0 : index
    %c0_13 = arith.constant 0 : index
    %18 = vector.load %arg3[%c0_12, %c0_13] : memref<8x72xf32, #tpu.memory_space<vmem>>, vector<8x72xf32>
    %cst_14 = arith.constant 0.000000e+00 : f32
    %19 = vector.broadcast %cst_14 : f32 to vector<8x34xf32>
    %20 = tpu.concatenate %17, %19 in 1 : vector<8x256xf32>, vector<8x34xf32> -> vector<8x290xf32>
    %21 = vector.extract_strided_slice %20 {offsets = [0, 0], sizes = [8, 256], strides = [1, 1]} : vector<8x290xf32> to vector<8x256xf32>
    %22 = vector.extract_strided_slice %20 {offsets = [0, 1], sizes = [8, 256], strides = [1, 1]} : vector<8x290xf32> to vector<8x256xf32>
    %23 = vector.extract_strided_slice %20 {offsets = [0, 2], sizes = [8, 256], strides = [1, 1]} : vector<8x290xf32> to vector<8x256xf32>
    %24 = vector.extract_strided_slice %20 {offsets = [0, 16], sizes = [8, 256], strides = [1, 1]} : vector<8x290xf32> to vector<8x256xf32>
    %25 = vector.extract_strided_slice %20 {offsets = [0, 17], sizes = [8, 256], strides = [1, 1]} : vector<8x290xf32> to vector<8x256xf32>
    %26 = vector.extract_strided_slice %20 {offsets = [0, 18], sizes = [8, 256], strides = [1, 1]} : vector<8x290xf32> to vector<8x256xf32>
    %27 = vector.extract_strided_slice %20 {offsets = [0, 32], sizes = [8, 256], strides = [1, 1]} : vector<8x290xf32> to vector<8x256xf32>
    %28 = vector.extract_strided_slice %20 {offsets = [0, 33], sizes = [8, 256], strides = [1, 1]} : vector<8x290xf32> to vector<8x256xf32>
    %29 = vector.extract_strided_slice %20 {offsets = [0, 34], sizes = [8, 256], strides = [1, 1]} : vector<8x290xf32> to vector<8x256xf32>
    %30 = tpu.concatenate %21, %22, %23, %24, %25, %26, %27, %28, %29 in 0 : vector<8x256xf32>, vector<8x256xf32>, vector<8x256xf32>, vector<8x256xf32>, vector<8x256xf32>, vector<8x256xf32>, vector<8x256xf32>, vector<8x256xf32>, vector<8x256xf32> -> vector<72x256xf32>
    %cst_15 = arith.constant dense<0.000000e+00> : vector<8x256xf32>
    %31 = tpu.matmul %18, %30, %cst_15 {dimension_numbers = #tpu.dot_dimension_numbers<[1], [0], [0], [1], [0, 0, 1, 1], [], []>} : vector<8x72xf32>, vector<72x256xf32>, vector<8x256xf32> -> vector<8x256xf32>
    %32 = vector.extract_strided_slice %2 {offsets = [8, 0], sizes = [8, 1], strides = [1, 1]} : vector<32x1xf32> to vector<8x1xf32>
    %33 = vector.broadcast %32 : vector<8x1xf32> to vector<8x256xf32>
    %34 = arith.addf %31, %33 : vector<8x256xf32>
    %35 = vector.extract_strided_slice %3 {offsets = [1, 0], sizes = [1, 1], strides = [1, 1]} : vector<4x1xf32> to vector<1x1xf32>
    %cst_16 = arith.constant 0.000000e+00 : f32
    %36 = vector.broadcast %cst_16 : f32 to vector<8x256xf32>
    %37 = arith.maximumf %34, %36 : vector<8x256xf32>
    %cst_17 = arith.constant 0.000000e+00 : f32
    %38 = vector.broadcast %cst_17 : f32 to vector<8x256xf32>
    %39 = arith.minimumf %34, %38 : vector<8x256xf32>
    %40 = vector.broadcast %35 : vector<1x1xf32> to vector<8x256xf32>
    %41 = arith.mulf %40, %39 : vector<8x256xf32>
    %42 = arith.addf %37, %41 : vector<8x256xf32>
    %43 = vector.broadcast %4 : vector<1x256xf32> to vector<8x256xf32>
    %44 = arith.mulf %42, %43 : vector<8x256xf32>
    %c0_18 = arith.constant 0 : index
    %c0_19 = arith.constant 0 : index
    %45 = vector.load %arg4[%c0_18, %c0_19] : memref<8x72xf32, #tpu.memory_space<vmem>>, vector<8x72xf32>
    %cst_20 = arith.constant 0.000000e+00 : f32
    %46 = vector.broadcast %cst_20 : f32 to vector<8x34xf32>
    %47 = tpu.concatenate %46, %44 in 1 : vector<8x34xf32>, vector<8x256xf32> -> vector<8x290xf32>
    %48 = vector.extract_strided_slice %47 {offsets = [0, 34], sizes = [8, 256], strides = [1, 1]} : vector<8x290xf32> to vector<8x256xf32>
    %49 = vector.extract_strided_slice %47 {offsets = [0, 33], sizes = [8, 256], strides = [1, 1]} : vector<8x290xf32> to vector<8x256xf32>
    %50 = vector.extract_strided_slice %47 {offsets = [0, 32], sizes = [8, 256], strides = [1, 1]} : vector<8x290xf32> to vector<8x256xf32>
    %51 = vector.extract_strided_slice %47 {offsets = [0, 18], sizes = [8, 256], strides = [1, 1]} : vector<8x290xf32> to vector<8x256xf32>
    %52 = vector.extract_strided_slice %47 {offsets = [0, 17], sizes = [8, 256], strides = [1, 1]} : vector<8x290xf32> to vector<8x256xf32>
    %53 = vector.extract_strided_slice %47 {offsets = [0, 16], sizes = [8, 256], strides = [1, 1]} : vector<8x290xf32> to vector<8x256xf32>
    %54 = vector.extract_strided_slice %47 {offsets = [0, 2], sizes = [8, 256], strides = [1, 1]} : vector<8x290xf32> to vector<8x256xf32>
    %55 = vector.extract_strided_slice %47 {offsets = [0, 1], sizes = [8, 256], strides = [1, 1]} : vector<8x290xf32> to vector<8x256xf32>
    %56 = vector.extract_strided_slice %47 {offsets = [0, 0], sizes = [8, 256], strides = [1, 1]} : vector<8x290xf32> to vector<8x256xf32>
    %57 = tpu.concatenate %48, %49, %50, %51, %52, %53, %54, %55, %56 in 0 : vector<8x256xf32>, vector<8x256xf32>, vector<8x256xf32>, vector<8x256xf32>, vector<8x256xf32>, vector<8x256xf32>, vector<8x256xf32>, vector<8x256xf32>, vector<8x256xf32> -> vector<72x256xf32>
    %cst_21 = arith.constant dense<0.000000e+00> : vector<8x256xf32>
    %58 = tpu.matmul %45, %57, %cst_21 {dimension_numbers = #tpu.dot_dimension_numbers<[1], [0], [0], [1], [0, 0, 1, 1], [], []>} : vector<8x72xf32>, vector<72x256xf32>, vector<8x256xf32> -> vector<8x256xf32>
    %59 = vector.extract_strided_slice %2 {offsets = [16, 0], sizes = [8, 1], strides = [1, 1]} : vector<32x1xf32> to vector<8x1xf32>
    %60 = vector.broadcast %59 : vector<8x1xf32> to vector<8x256xf32>
    %61 = arith.addf %58, %60 : vector<8x256xf32>
    %62 = vector.extract_strided_slice %3 {offsets = [2, 0], sizes = [1, 1], strides = [1, 1]} : vector<4x1xf32> to vector<1x1xf32>
    %cst_22 = arith.constant 0.000000e+00 : f32
    %63 = vector.broadcast %cst_22 : f32 to vector<8x256xf32>
    %64 = arith.maximumf %61, %63 : vector<8x256xf32>
    %cst_23 = arith.constant 0.000000e+00 : f32
    %65 = vector.broadcast %cst_23 : f32 to vector<8x256xf32>
    %66 = arith.minimumf %61, %65 : vector<8x256xf32>
    %67 = vector.broadcast %62 : vector<1x1xf32> to vector<8x256xf32>
    %68 = arith.mulf %67, %66 : vector<8x256xf32>
    %69 = arith.addf %64, %68 : vector<8x256xf32>
    %c0_24 = arith.constant 0 : index
    %c0_25 = arith.constant 0 : index
    %70 = vector.load %arg5[%c0_24, %c0_25] : memref<8x72xf32, #tpu.memory_space<vmem>>, vector<8x72xf32>
    %71 = arith.subf %69, %17 : vector<8x256xf32>
    %cst_26 = arith.constant 0.000000e+00 : f32
    %72 = vector.broadcast %cst_26 : f32 to vector<8x34xf32>
    %73 = tpu.concatenate %71, %72 in 1 : vector<8x256xf32>, vector<8x34xf32> -> vector<8x290xf32>
    %74 = vector.extract_strided_slice %73 {offsets = [0, 0], sizes = [8, 256], strides = [1, 1]} : vector<8x290xf32> to vector<8x256xf32>
    %75 = vector.extract_strided_slice %73 {offsets = [0, 1], sizes = [8, 256], strides = [1, 1]} : vector<8x290xf32> to vector<8x256xf32>
    %76 = vector.extract_strided_slice %73 {offsets = [0, 2], sizes = [8, 256], strides = [1, 1]} : vector<8x290xf32> to vector<8x256xf32>
    %77 = vector.extract_strided_slice %73 {offsets = [0, 16], sizes = [8, 256], strides = [1, 1]} : vector<8x290xf32> to vector<8x256xf32>
    %78 = vector.extract_strided_slice %73 {offsets = [0, 17], sizes = [8, 256], strides = [1, 1]} : vector<8x290xf32> to vector<8x256xf32>
    %79 = vector.extract_strided_slice %73 {offsets = [0, 18], sizes = [8, 256], strides = [1, 1]} : vector<8x290xf32> to vector<8x256xf32>
    %80 = vector.extract_strided_slice %73 {offsets = [0, 32], sizes = [8, 256], strides = [1, 1]} : vector<8x290xf32> to vector<8x256xf32>
    %81 = vector.extract_strided_slice %73 {offsets = [0, 33], sizes = [8, 256], strides = [1, 1]} : vector<8x290xf32> to vector<8x256xf32>
    %82 = vector.extract_strided_slice %73 {offsets = [0, 34], sizes = [8, 256], strides = [1, 1]} : vector<8x290xf32> to vector<8x256xf32>
    %83 = tpu.concatenate %74, %75, %76, %77, %78, %79, %80, %81, %82 in 0 : vector<8x256xf32>, vector<8x256xf32>, vector<8x256xf32>, vector<8x256xf32>, vector<8x256xf32>, vector<8x256xf32>, vector<8x256xf32>, vector<8x256xf32>, vector<8x256xf32> -> vector<72x256xf32>
    %cst_27 = arith.constant dense<0.000000e+00> : vector<8x256xf32>
    %84 = tpu.matmul %70, %83, %cst_27 {dimension_numbers = #tpu.dot_dimension_numbers<[1], [0], [0], [1], [0, 0, 1, 1], [], []>} : vector<8x72xf32>, vector<72x256xf32>, vector<8x256xf32> -> vector<8x256xf32>
    %85 = vector.extract_strided_slice %2 {offsets = [24, 0], sizes = [8, 1], strides = [1, 1]} : vector<32x1xf32> to vector<8x1xf32>
    %86 = vector.broadcast %85 : vector<8x1xf32> to vector<8x256xf32>
    %87 = arith.addf %84, %86 : vector<8x256xf32>
    %88 = vector.extract_strided_slice %3 {offsets = [3, 0], sizes = [1, 1], strides = [1, 1]} : vector<4x1xf32> to vector<1x1xf32>
    %cst_28 = arith.constant 0.000000e+00 : f32
    %89 = vector.broadcast %cst_28 : f32 to vector<8x256xf32>
    %90 = arith.maximumf %87, %89 : vector<8x256xf32>
    %cst_29 = arith.constant 0.000000e+00 : f32
    %91 = vector.broadcast %cst_29 : f32 to vector<8x256xf32>
    %92 = arith.minimumf %87, %91 : vector<8x256xf32>
    %93 = vector.broadcast %88 : vector<1x1xf32> to vector<8x256xf32>
    %94 = arith.mulf %93, %92 : vector<8x256xf32>
    %95 = arith.addf %90, %94 : vector<8x256xf32>
    %96 = arith.addf %95, %42 : vector<8x256xf32>
    %97 = vector.extract_strided_slice %96 {offsets = [0, 0], sizes = [8, 224], strides = [1, 1]} : vector<8x256xf32> to vector<8x224xf32>
    %c0_30 = arith.constant 0 : index
    %c0_31 = arith.constant 0 : index
    %c0_32 = arith.constant 0 : index
    %98 = vector.load %arg9[%c0_30, %c0_31, %c0_32] : memref<1x8x224xf32, #tpu.memory_space<vmem>>, vector<1x8x224xf32>
    %99 = vector.shape_cast %98 : vector<1x8x224xf32> to vector<8x224xf32>
    %100 = vector.shape_cast %97 : vector<8x224xf32> to vector<1x8x224xf32>
    tpu.vector_store %arg9[%c0_30, %c0_31, %c0_32], %100 {strides = array<i32>} : memref<1x8x224xf32, #tpu.memory_space<vmem>>, vector<1x8x224xf32>,
    return
  }
  func.func @transform_0(%arg0: i32) -> (i32, i32, i32) {
    %c0_i32 = arith.constant 0 : i32
    %c0_i32_0 = arith.constant 0 : i32
    %c0_i32_1 = arith.constant 0 : i32
    return %arg0, %c0_i32, %c0_i32_0 : i32, i32, i32
  }
  func.func @transform_1(%arg0: i32) -> (i32, i32) {
    %c0_i32 = arith.constant 0 : i32
    %c0_i32_0 = arith.constant 0 : i32
    %c0_i32_1 = arith.constant 0 : i32
    return %c0_i32, %c0_i32_0 : i32, i32
  }
  func.func @transform_2(%arg0: i32) -> (i32, i32) {
    %c0_i32 = arith.constant 0 : i32
    %c0_i32_0 = arith.constant 0 : i32
    %c0_i32_1 = arith.constant 0 : i32
    return %c0_i32, %c0_i32_0 : i32, i32
  }
  func.func @transform_3(%arg0: i32) -> (i32, i32) {
    %c0_i32 = arith.constant 0 : i32
    %c0_i32_0 = arith.constant 0 : i32
    %c0_i32_1 = arith.constant 0 : i32
    return %c0_i32, %c0_i32_0 : i32, i32
  }
  func.func @transform_4(%arg0: i32) -> (i32, i32) {
    %c0_i32 = arith.constant 0 : i32
    %c0_i32_0 = arith.constant 0 : i32
    %c0_i32_1 = arith.constant 0 : i32
    return %c0_i32, %c0_i32_0 : i32, i32
  }
  func.func @transform_5(%arg0: i32) -> (i32, i32) {
    %c0_i32 = arith.constant 0 : i32
    %c0_i32_0 = arith.constant 0 : i32
    %c0_i32_1 = arith.constant 0 : i32
    return %c0_i32, %c0_i32_0 : i32, i32
  }
  func.func @transform_6(%arg0: i32) -> (i32, i32) {
    %c0_i32 = arith.constant 0 : i32
    %c0_i32_0 = arith.constant 0 : i32
    %c0_i32_1 = arith.constant 0 : i32
    return %c0_i32, %c0_i32_0 : i32, i32
  }
  func.func @transform_7(%arg0: i32) -> (i32, i32) {
    %c0_i32 = arith.constant 0 : i32
    %c0_i32_0 = arith.constant 0 : i32
    %c0_i32_1 = arith.constant 0 : i32
    return %c0_i32, %c0_i32_0 : i32, i32
  }
  func.func @transform_8(%arg0: i32) -> (i32, i32, i32) {
    %c0_i32 = arith.constant 0 : i32
    %c0_i32_0 = arith.constant 0 : i32
    %c0_i32_1 = arith.constant 0 : i32
    return %arg0, %c0_i32, %c0_i32_0 : i32, i32, i32
  }
}

</mosaic_0001>

<llo_original>
// kernel: tpu_custom_call.1
$region0: #{tpu_custom_call.1}
  #allocation0 [shape = 'u32[]', space=smem, size = 0x4, offset = 0x4, fixed_abs, tag = 'smem constant byte address 0x4 - core index']
  #allocation1 [shape = 'u32[144,128]{1,0:T(1,128)}', space=vmem, size = 0x12000, scoped, tag = 'internal scratch']
  %s0 = inlined_call_operand.vmem [shape: f32[2,4,256], index: 0, kind: input, shape index: {}]
  %s1 = inlined_call_operand.vmem [shape: f32[8,4], index: 1, kind: input, shape index: {}]
  %s2 = inlined_call_operand.vmem [shape: f32[8,72], index: 2, kind: input, shape index: {}]
  %s3 = inlined_call_operand.vmem [shape: f32[8,72], index: 3, kind: input, shape index: {}]
  %s4 = inlined_call_operand.vmem [shape: f32[8,72], index: 4, kind: input, shape index: {}]
  %s5 = inlined_call_operand.vmem [shape: f32[32,1], index: 5, kind: input, shape index: {}]
  %s6 = inlined_call_operand.vmem [shape: f32[4,1], index: 6, kind: input, shape index: {}]
  %s7 = inlined_call_operand.vmem [shape: f32[1,256], index: 7, kind: input, shape index: {}]
  %s8 = inlined_call_operand.hbm [shape: f32[2,8,224], index: 8, kind: output, shape index: {}]
  %s9 = sld [smem:[#allocation0]]
  $region65: #{tpu_custom_call.1} parent=0
    _
  %s11 = ssub.s32 1, %s9
  %s12 = scalar_select 0, %s11, %s9
  $region1: #{tpu_custom_call.1} parent=0
    #allocation2 [shape = 'u8[16384]{0}', space=vmem, size = 0x4000, scoped, tag = 'output window, operand 0']
    #allocation3 [shape = 's32[2]{0}', space=sflag, size = 0x8, scoped, tag = 'scoped memory for tpu_custom_call.1']
    %13 = vsyncpa [#allocation3], 0
    %s14 = scalar_lea.sflag [#allocation3], 1
    %15 = vsyncpa %s14, 0
    loop: start=0, step=1, limit=4
    $region2: #{tpu_custom_call.1} parent=1 // loop_pre_header
      _
    $region3: #{tpu_custom_call.1} parent=1 // loop_header
      %s17 = sphi 0, %s21
      %p18 = scmp.ge.s32.totalorder %s17, 4
      %s27 = sphi 0, %s29
      %s30 = sphi 0, %s27
      %s31 = sphi 0, %s30
      %s47 = sphi 0, %s31
      %s51 = sphi 0, %s51
      %s53 = sphi 0, %s51
      %s54 = sphi 0, %s53
      %s68 = sphi 0, %s54
      %s72 = sphi 0, %s72
      %s74 = sphi 0, %s72
      %s75 = sphi 0, %s74
      %s89 = sphi 0, %s75
      %s93 = sphi 0, %s93
      %s95 = sphi 0, %s93
      %s96 = sphi 0, %s95
      %s110 = sphi 0, %s96
      %s114 = sphi 0, %s114
      %s116 = sphi 0, %s114
      %s117 = sphi 0, %s116
      %s131 = sphi 0, %s117
      %s135 = sphi 0, %s135
      %s137 = sphi 0, %s135
      %s138 = sphi 0, %s137
      %s152 = sphi 0, %s138
      %s156 = sphi 0, %s156
      %s158 = sphi 0, %s156
      %s159 = sphi 0, %s158
      %s173 = sphi 0, %s159
      %s177 = sphi 0, %s177
      %s179 = sphi 0, %s177
      %s180 = sphi 0, %s179
      %s194 = sphi 0, %s180
      %s200 = sphi 0, %s202
      %s203 = sphi 0, %s200
      %s204 = sphi 0, %s203
      %s220 = sphi 0, %s204
    $region4: #{tpu_custom_call.1} parent=1 // loop_header_branch
      %20 = sbr.rel (%p18) target = $region8
    $region5: #{tpu_custom_call.1} parent=1 // loop_body
      %s22 = ssub.s32 %s17, 1
      %s23 = ssub.s32 %s17, 2
      %s24 = sadd.s32 %s17, 1
      %s25 = ssub.s32 %s17, %s24
      %p26 = scmp.eq.s32.totalorder %s25, 0
      %s28 = sadd.s32 %s27, 1
      %s29 = scalar_select %p26, %s27, %s28
      %p32 = pneg %p26
      %p33 = scmp.eq.s32.totalorder %s17, 1
      %p34 = por %p32, %p33
      %p35 = scmp.ne.s32.totalorder %s27, %s30
      %p36 = scmp.eq.s32.totalorder %s17, 0
      %p37 = por %p35, %p36
      %p38 = scmp.ne.s32.totalorder %s27, %s30
      %p39 = scmp.eq.s32.totalorder %s22, 1
      %p40 = por %p38, %p39
      %p41 = scmp.ne.s32.totalorder %s30, %s31
      %p42 = scmp.eq.s32.totalorder %s22, 0
      %p43 = por %p41, %p42
      %p44 = scmp.ne.s32.totalorder %s30, %s31
      %p45 = scmp.eq.s32.totalorder %s23, 1
      %p46 = por %p44, %p45
      %p48 = scmp.ne.s32.totalorder %s31, %s47
      %p49 = scmp.eq.s32.totalorder %s23, 0
      %p50 = por %p48, %p49
      %s52 = sadd.s32 %s51, 1
      %p55 = scmp.eq.s32.totalorder %s17, 1
      %p56 = scmp.ne.s32.totalorder %s51, %s53
      %p57 = scmp.eq.s32.totalorder %s17, 0
      %p58 = por %p56, %p57
      %p59 = scmp.ne.s32.totalorder %s51, %s53
      %p60 = scmp.eq.s32.totalorder %s22, 1
      %p61 = por %p59, %p60
      %p62 = scmp.ne.s32.totalorder %s53, %s54
      %p63 = scmp.eq.s32.totalorder %s22, 0
      %p64 = por %p62, %p63
      %p65 = scmp.ne.s32.totalorder %s53, %s54
      %p66 = scmp.eq.s32.totalorder %s23, 1
      %p67 = por %p65, %p66
      %p69 = scmp.ne.s32.totalorder %s54, %s68
      %p70 = scmp.eq.s32.totalorder %s23, 0
      %p71 = por %p69, %p70
      %s73 = sadd.s32 %s72, 1
      %p76 = scmp.eq.s32.totalorder %s17, 1
      %p77 = scmp.ne.s32.totalorder %s72, %s74
      %p78 = scmp.eq.s32.totalorder %s17, 0
      %p79 = por %p77, %p78
      %p80 = scmp.ne.s32.totalorder %s72, %s74
      %p81 = scmp.eq.s32.totalorder %s22, 1
      %p82 = por %p80, %p81
      %p83 = scmp.ne.s32.totalorder %s74, %s75
      %p84 = scmp.eq.s32.totalorder %s22, 0
      %p85 = por %p83, %p84
      %p86 = scmp.ne.s32.totalorder %s74, %s75
      %p87 = scmp.eq.s32.totalorder %s23, 1
      %p88 = por %p86, %p87
      %p90 = scmp.ne.s32.totalorder %s75, %s89
      %p91 = scmp.eq.s32.totalorder %s23, 0
      %p92 = por %p90, %p91
      %s94 = sadd.s32 %s93, 1
      %p97 = scmp.eq.s32.totalorder %s17, 1
      %p98 = scmp.ne.s32.totalorder %s93, %s95
      %p99 = scmp.eq.s32.totalorder %s17, 0
      %p100 = por %p98, %p99
      %p101 = scmp.ne.s32.totalorder %s93, %s95
      %p102 = scmp.eq.s32.totalorder %s22, 1
      %p103 = por %p101, %p102
      %p104 = scmp.ne.s32.totalorder %s95, %s96
      %p105 = scmp.eq.s32.totalorder %s22, 0
      %p106 = por %p104, %p105
      %p107 = scmp.ne.s32.totalorder %s95, %s96
      %p108 = scmp.eq.s32.totalorder %s23, 1
      %p109 = por %p107, %p108
      %p111 = scmp.ne.s32.totalorder %s96, %s110
      %p112 = scmp.eq.s32.totalorder %s23, 0
      %p113 = por %p111, %p112
      %s115 = sadd.s32 %s114, 1
      %p118 = scmp.eq.s32.totalorder %s17, 1
      %p119 = scmp.ne.s32.totalorder %s114, %s116
      %p120 = scmp.eq.s32.totalorder %s17, 0
      %p121 = por %p119, %p120
      %p122 = scmp.ne.s32.totalorder %s114, %s116
      %p123 = scmp.eq.s32.totalorder %s22, 1
      %p124 = por %p122, %p123
      %p125 = scmp.ne.s32.totalorder %s116, %s117
      %p126 = scmp.eq.s32.totalorder %s22, 0
      %p127 = por %p125, %p126
      %p128 = scmp.ne.s32.totalorder %s116, %s117
      %p129 = scmp.eq.s32.totalorder %s23, 1
      %p130 = por %p128, %p129
      %p132 = scmp.ne.s32.totalorder %s117, %s131
      %p133 = scmp.eq.s32.totalorder %s23, 0
      %p134 = por %p132, %p133
      %s136 = sadd.s32 %s135, 1
      %p139 = scmp.eq.s32.totalorder %s17, 1
      %p140 = scmp.ne.s32.totalorder %s135, %s137
      %p141 = scmp.eq.s32.totalorder %s17, 0
      %p142 = por %p140, %p141
      %p143 = scmp.ne.s32.totalorder %s135, %s137
      %p144 = scmp.eq.s32.totalorder %s22, 1
      %p145 = por %p143, %p144
      %p146 = scmp.ne.s32.totalorder %s137, %s138
      %p147 = scmp.eq.s32.totalorder %s22, 0
      %p148 = por %p146, %p147
      %p149 = scmp.ne.s32.totalorder %s137, %s138
      %p150 = scmp.eq.s32.totalorder %s23, 1
      %p151 = por %p149, %p150
      %p153 = scmp.ne.s32.totalorder %s138, %s152
      %p154 = scmp.eq.s32.totalorder %s23, 0
      %p155 = por %p153, %p154
      %s157 = sadd.s32 %s156, 1
      %p160 = scmp.eq.s32.totalorder %s17, 1
      %p161 = scmp.ne.s32.totalorder %s156, %s158
      %p162 = scmp.eq.s32.totalorder %s17, 0
      %p163 = por %p161, %p162
      %p164 = scmp.ne.s32.totalorder %s156, %s158
      %p165 = scmp.eq.s32.totalorder %s22, 1
      %p166 = por %p164, %p165
      %p167 = scmp.ne.s32.totalorder %s158, %s159
      %p168 = scmp.eq.s32.totalorder %s22, 0
      %p169 = por %p167, %p168
      %p170 = scmp.ne.s32.totalorder %s158, %s159
      %p171 = scmp.eq.s32.totalorder %s23, 1
      %p172 = por %p170, %p171
      %p174 = scmp.ne.s32.totalorder %s159, %s173
      %p175 = scmp.eq.s32.totalorder %s23, 0
      %p176 = por %p174, %p175
      %s178 = sadd.s32 %s177, 1
      %p181 = scmp.eq.s32.totalorder %s17, 1
      %p182 = scmp.ne.s32.totalorder %s177, %s179
      %p183 = scmp.eq.s32.totalorder %s17, 0
      %p184 = por %p182, %p183
      %p185 = scmp.ne.s32.totalorder %s177, %s179
      %p186 = scmp.eq.s32.totalorder %s22, 1
      %p187 = por %p185, %p186
      %p188 = scmp.ne.s32.totalorder %s179, %s180
      %p189 = scmp.eq.s32.totalorder %s22, 0
      %p190 = por %p188, %p189
      %p191 = scmp.ne.s32.totalorder %s179, %s180
      %p192 = scmp.eq.s32.totalorder %s23, 1
      %p193 = por %p191, %p192
      %p195 = scmp.ne.s32.totalorder %s180, %s194
      %p196 = scmp.eq.s32.totalorder %s23, 0
      %p197 = por %p195, %p196
      %s198 = ssub.s32 %s17, %s24
      %p199 = scmp.eq.s32.totalorder %s198, 0
      %s201 = sadd.s32 %s200, 1
      %s202 = scalar_select %p199, %s200, %s201
      %p205 = pneg %p199
      %p206 = scmp.eq.s32.totalorder %s17, 1
      %p207 = por %p205, %p206
      %p208 = scmp.ne.s32.totalorder %s200, %s203
      %p209 = scmp.eq.s32.totalorder %s17, 0
      %p210 = por %p208, %p209
      %p211 = scmp.ne.s32.totalorder %s200, %s203
      %p212 = scmp.eq.s32.totalorder %s22, 1
      %p213 = por %p211, %p212
      %p214 = scmp.ne.s32.totalorder %s203, %s204
      %p215 = scmp.eq.s32.totalorder %s22, 0
      %p216 = por %p214, %p215
      %p217 = scmp.ne.s32.totalorder %s203, %s204
      %p218 = scmp.eq.s32.totalorder %s23, 1
      %p219 = por %p217, %p218
      %p221 = scmp.ne.s32.totalorder %s204, %s220
      %p222 = scmp.eq.s32.totalorder %s23, 0
      %p223 = por %p221, %p222
      %p224 = scmp.le.s32.totalorder 1, %s17
      %p225 = scmp.lt.s32.totalorder %s17, 3
      %p226 = pnand %p224, %p225
      %p227 = pneg %p226
      // Predicated region
      $region9: #{tpu_custom_call.1} parent=5 // pred_check
        _
      $region10: #{tpu_custom_call.1} parent=5 // pred_check_branch
        %229 = sbr.rel (%p226) target = $region12
      $region11: #{tpu_custom_call.1} parent=5 // pred_region
        %s230 = ssub.s32 %s17, 1
        // Predicated region
        $region13: #{tpu_custom_call.1} parent=11 // pred_check
          %p231 = pneg %p64
        $region14: #{tpu_custom_call.1} parent=11 // pred_check_branch
          %233 = sbr.rel (%p231) target = $region16
        $region15: #{tpu_custom_call.1} parent=11 // pred_region
          _
        $region16: #{tpu_custom_call.1} parent=11 // pred_fallthru
          _
        // Predicated region
        $region17: #{tpu_custom_call.1} parent=11 // pred_check
          %p234 = pneg %p85
        $region18: #{tpu_custom_call.1} parent=11 // pred_check_branch
          %236 = sbr.rel (%p234) target = $region20
        $region19: #{tpu_custom_call.1} parent=11 // pred_region
          _
        $region20: #{tpu_custom_call.1} parent=11 // pred_fallthru
          _
        // Predicated region
        $region21: #{tpu_custom_call.1} parent=11 // pred_check
          %p237 = pneg %p106
        $region22: #{tpu_custom_call.1} parent=11 // pred_check_branch
          %239 = sbr.rel (%p237) target = $region24
        $region23: #{tpu_custom_call.1} parent=11 // pred_region
          _
        $region24: #{tpu_custom_call.1} parent=11 // pred_fallthru
          _
        // Predicated region
        $region25: #{tpu_custom_call.1} parent=11 // pred_check
          %p240 = pneg %p127
        $region26: #{tpu_custom_call.1} parent=11 // pred_check_branch
          %242 = sbr.rel (%p240) target = $region28
        $region27: #{tpu_custom_call.1} parent=11 // pred_region
          _
        $region28: #{tpu_custom_call.1} parent=11 // pred_fallthru
          _
        // Predicated region
        $region29: #{tpu_custom_call.1} parent=11 // pred_check
          %p243 = pneg %p148
        $region30: #{tpu_custom_call.1} parent=11 // pred_check_branch
          %245 = sbr.rel (%p243) target = $region32
        $region31: #{tpu_custom_call.1} parent=11 // pred_region
          _
        $region32: #{tpu_custom_call.1} parent=11 // pred_fallthru
          _
        // Predicated region
        $region33: #{tpu_custom_call.1} parent=11 // pred_check
          %p246 = pneg %p169
        $region34: #{tpu_custom_call.1} parent=11 // pred_check_branch
          %248 = sbr.rel (%p246) target = $region36
        $region35: #{tpu_custom_call.1} parent=11 // pred_region
          _
        $region36: #{tpu_custom_call.1} parent=11 // pred_fallthru
          _
        // Predicated region
        $region37: #{tpu_custom_call.1} parent=11 // pred_check
          %p249 = pneg %p190
        $region38: #{tpu_custom_call.1} parent=11 // pred_check_branch
          %251 = sbr.rel (%p249) target = $region40
        $region39: #{tpu_custom_call.1} parent=11 // pred_region
          _
        $region40: #{tpu_custom_call.1} parent=11 // pred_fallthru
          _
      $region12: #{tpu_custom_call.1} parent=5 // pred_fallthru
        _
      %p252 = scmp.lt.s32.totalorder %s17, 2
      // Predicated region
      $region41: #{tpu_custom_call.1} parent=5 // pred_check
        %p253 = pneg %p252
      $region42: #{tpu_custom_call.1} parent=5 // pred_check_branch
        %255 = sbr.rel (%p253) target = $region44
      $region43: #{tpu_custom_call.1} parent=5 // pred_region
        // Predicated region
        $region45: #{tpu_custom_call.1} parent=43 // pred_check
          %p256 = pneg %p37
        $region46: #{tpu_custom_call.1} parent=43 // pred_check_branch
          %258 = sbr.rel (%p256) target = $region48
        $region47: #{tpu_custom_call.1} parent=43 // pred_region
          %p259 = scmp.lt.s32.totalorder %s17, 1
          %s260 = scalar_select %p259, %s17, 1
          %s261 = smul.addr %s260, 2
          %s262 = smul.addr %s261, 4
          %s263 = scalar_lea.vmem %s0, %s262
        $region48: #{tpu_custom_call.1} parent=43 // pred_fallthru
          _
      $region44: #{tpu_custom_call.1} parent=5 // pred_fallthru
        _
      %p264 = scmp.le.s32.totalorder 1, %s17
      %p265 = scmp.lt.s32.totalorder %s17, 3
      %p266 = pnand %p264, %p265
      %p267 = pneg %p266
      // Predicated region
      $region49: #{tpu_custom_call.1} parent=5 // pred_check
        _
      $region50: #{tpu_custom_call.1} parent=5 // pred_check_branch
        %269 = sbr.rel (%p266) target = $region52
      $region51: #{tpu_custom_call.1} parent=5 // pred_region
        %s270 = ssub.s32 %s17, 1
        %p271 = scmp.lt.s32.totalorder %s22, 1
        %s272 = scalar_select %p271, %s22, 1
        %s273 = smul.addr %s272, 2
        %s274 = smul.addr %s273, 4
        %s275 = scalar_lea.vmem %s0, %s274
        %p276 = pneg %p43
        %p277 = pneg %p40
        %p278 = pneg %p64
        %p279 = pneg %p61
        %p280 = pneg %p85
        %p281 = pneg %p82
        %p282 = pneg %p106
        %p283 = pneg %p103
        %p284 = pneg %p127
        %p285 = pneg %p124
        %p286 = pneg %p148
        %p287 = pneg %p145
        %p288 = pneg %p169
        %p289 = pneg %p166
        %p290 = pneg %p190
        %p291 = pneg %p187
        %p292 = pneg %p216
        %p293 = pneg %p213
        %s294 = sand.u32 %s203, 1
        %s295 = scalar_lea.sflag [#allocation3], %s294
        %s296 = sand.u32 %s203, 1
        %s297 = smul.addr %s296, 16
        %s298 = scalar_lea.vmem [#allocation2], %s297
        %p299 = scmp.lt.s32.totalorder %s22, 1
        %s300 = scalar_select %p299, %s22, 1
        %s301 = smul.addr %s300, 2
        %s302 = smul.addr %s301, 4
        %s303 = scalar_lea.vmem %s0, %s302
        %v304 = vld [vmem:[%s303] sm:$0xff]
        %v305 = vld [vmem:[%s5] sm:$0xff]
        %v306 = vld [vmem:[%s5 + $0x8] sm:$0xff]
        %v307 = vld [vmem:[%s5 + $0x10] sm:$0xff]
        %v308 = vld [vmem:[%s5 + $0x18] sm:$0xff]
        %v309 = vld [vmem:[%s6] sm:$0xf]
        %v310 = vld [vmem:[%s7] sm:$0x3]
        %v311 = vld [vmem:[%s1] sm:$0xff]
        %313 = vset.pattern.permute.xlu0 0
        %314 = vperm.xlu0 %313, %v305
        %v315 = vpop.permute.xlu0 %314
        %v318 = vcombine.high %v304, %v304
        %vm319 = vcmask 31744
        %v321 = vsel %vm319, %v311, 0
        %vm323 = vcmask 1043456
        %v324 = vsel %vm323, %v304, 0
        %v326 = vsel %vm323, %v318, 0
        %328 = vmatprep.subr.mxu0 %v326
        %329 = vmatpush1.msra.mxu0 %v324
        %330 = vmatprep.subr.mxu0 0.0
        %331 = vmatpush1.msra.mxu0 0.0
        %332 = vmatprep.subr.mxu0 0.0
        %333 = vmatpush1.msra.mxu0 0.0
        %334 = vmatprep.subr.mxu0 0.0
        %335 = vmatpush1.msra.mxu0 0.0
        %336 = vmatprep.subr.mxu0 0.0
        %337 = vmatpush1.msra.mxu0 0.0
        %338 = vmatprep.subr.mxu0 0.0
        %339 = vmatpush1.msra.mxu0 0.0
        %340 = vmatprep.subr.mxu0 0.0
        %341 = vmatpush1.msra.mxu0 0.0
        %342 = vmatprep.subr.mxu0 0.0
        %343 = vmatpush1.msra.mxu0 0.0
        %344 = vmatprep.subr.mxu0 0.0
        %345 = vmatpush1.msra.mxu0 0.0
        %346 = vmatprep.subr.mxu0 0.0
        %347 = vmatpush1.msra.mxu0 0.0
        %348 = vmatprep.subr.mxu0 0.0
        %349 = vmatpush1.msra.mxu0 0.0
        %350 = vmatprep.subr.mxu0 0.0
        %351 = vmatpush1.msra.mxu0 0.0
        %352 = vmatprep.subr.mxu0 0.0
        %353 = vmatpush1.msra.mxu0 0.0
        %354 = vmatprep.subr.mxu0 0.0
        %355 = vmatpush1.msra.mxu0 0.0
        %356 = vmatprep.subr.mxu0 0.0
        %357 = vmatpush1.msra.mxu0 0.0
        %358 = vmatprep.subr.mxu0 0.0
        %359 = vmatpush1.msra.mxu0 0.0
        %360 = vmatprep.subr.mxu0 0.0
        %361 = vmatpush1.msra.mxu0 0.0
        %362 = vmatprep.subr.mxu0 0.0
        %363 = vmatpush1.msra.mxu0 0.0
        %364 = vmatprep.subr.mxu0 0.0
        %365 = vmatpush1.msra.mxu0 0.0
        %366 = vmatprep.subr.mxu0 0.0
        %367 = vmatpush1.msra.mxu0 0.0
        %368 = vmatprep.subr.mxu0 0.0
        %369 = vmatpush1.msra.mxu0 0.0
        %370 = vmatprep.subr.mxu0 0.0
        %371 = vmatpush1.msra.mxu0 0.0
        %372 = vmatprep.subr.mxu0 0.0
        %373 = vmatpush1.msra.mxu0 0.0
        %374 = vmatprep.subr.mxu0 0.0
        %375 = vmatpush1.msra.mxu0 0.0
        %376 = vmatprep.subr.mxu0 0.0
        %377 = vmatpush1.msra.mxu0 0.0
        %378 = vmatprep.subr.mxu0 0.0
        %379 = vmatpush1.msra.mxu0 0.0
        %380 = vmatprep.subr.mxu0 0.0
        %381 = vmatpush1.msra.mxu0 0.0
        %382 = vmatprep.subr.mxu0 0.0
        %383 = vmatpush1.msra.mxu0 0.0
        %384 = vmatprep.subr.mxu0 0.0
        %385 = vmatpush1.msra.mxu0 0.0
        %386 = vmatprep.subr.mxu0 0.0
        %387 = vmatpush1.msra.mxu0 0.0
        %388 = vmatprep.subr.mxu0 0.0
        %389 = vmatpush1.msra.mxu0 0.0
        %390 = vmatprep.subr.mxu0 0.0
        %391 = vmatpush1.msra.mxu0 0.0
        %392 = vmatprep.mubr.f32.mxu0 0.0
        %393 = vmatmul.mubr.f32.gmra.mrb[0].mxu0 %v321
        %v394 = vpop.f32.mrb[0].mxu0
        %v395 = vadd.f32 %v315, %v394
        %v396 = vpop.f32.mrb[0].mxu0
        %v397 = vadd.f32 %v315, %v396
        %398 = vdwg.mxu0
        %v399 = vmax.f32 %v395, 0.0
        %v400 = vmax.f32 %v397, 0.0
        %v401 = vmin.f32 %v395, 0.0
        %v402 = vmin.f32 %v397, 0.0
        %s404 = vtos %v309
        %v405 = vstv %s404
        %v407 = vmul.f32 %v405, %v401
        %v408 = vmul.f32 %v405, %v402
        %v409 = vadd.f32 %v399, %v407
        %v410 = vadd.f32 %v400, %v408
        %v411 = vld [vmem:[%s2] sm:$0xff]
        %415 = vrot.lane.b32.xlu0 %v409, 127
        %v416 = vpop.permute.xlu0 %415
        %417 = vrot.lane.b32.xlu0 %v410, 127
        %v418 = vpop.permute.xlu0 %417
        %419 = vrot.lane.b32.xlu0 0.0, 127
        %v420 = vpop.permute.xlu0 %419
        %vm421 = vcmask 1039360
        %v422 = vsel %vm421, %v416, %v418
        %v423 = vsel %vm421, %v418, %v420
        %426 = vrot.lane.b32.xlu0 %v409, 126
        %v427 = vpop.permute.xlu0 %426
        %428 = vrot.lane.b32.xlu0 %v410, 126
        %v429 = vpop.permute.xlu0 %428
        %430 = vrot.lane.b32.xlu0 0.0, 126
        %v431 = vpop.permute.xlu0 %430
        %vm432 = vcmask 1031168
        %v433 = vsel %vm432, %v427, %v429
        %v434 = vsel %vm432, %v429, %v431
        %437 = vrot.lane.b32.xlu0 %v409, 112
        %v438 = vpop.permute.xlu0 %437
        %439 = vrot.lane.b32.xlu0 %v410, 112
        %v440 = vpop.permute.xlu0 %439
        %441 = vrot.lane.b32.xlu0 0.0, 112
        %v442 = vpop.permute.xlu0 %441
        %vm443 = vcmask 916480
        %v444 = vsel %vm443, %v438, %v440
        %v445 = vsel %vm443, %v440, %v442
        %448 = vrot.lane.b32.xlu0 %v409, 111
        %v449 = vpop.permute.xlu0 %448
        %450 = vrot.lane.b32.xlu0 %v410, 111
        %v451 = vpop.permute.xlu0 %450
        %452 = vrot.lane.b32.xlu0 0.0, 111
        %v453 = vpop.permute.xlu0 %452
        %vm454 = vcmask 908288
        %v455 = vsel %vm454, %v449, %v451
        %v456 = vsel %vm454, %v451, %v453
        %459 = vrot.lane.b32.xlu0 %v409, 110
        %v460 = vpop.permute.xlu0 %459
        %461 = vrot.lane.b32.xlu0 %v410, 110
        %v462 = vpop.permute.xlu0 %461
        %463 = vrot.lane.b32.xlu0 0.0, 110
        %v464 = vpop.permute.xlu0 %463
        %vm465 = vcmask 900096
        %v466 = vsel %vm465, %v460, %v462
        %v467 = vsel %vm465, %v462, %v464
        %470 = vrot.lane.b32.xlu0 %v409, 96
        %v471 = vpop.permute.xlu0 %470
        %472 = vrot.lane.b32.xlu0 %v410, 96
        %v473 = vpop.permute.xlu0 %472
        %474 = vrot.lane.b32.xlu0 0.0, 96
        %v475 = vpop.permute.xlu0 %474
        %vm476 = vcmask 785408
        %v477 = vsel %vm476, %v471, %v473
        %v478 = vsel %vm476, %v473, %v475
        %481 = vrot.lane.b32.xlu0 %v409, 95
        %v482 = vpop.permute.xlu0 %481
        %483 = vrot.lane.b32.xlu0 %v410, 95
        %v484 = vpop.permute.xlu0 %483
        %485 = vrot.lane.b32.xlu0 0.0, 95
        %v486 = vpop.permute.xlu0 %485
        %vm487 = vcmask 777216
        %v488 = vsel %vm487, %v482, %v484
        %v489 = vsel %vm487, %v484, %v486
        %492 = vrot.lane.b32.xlu0 %v409, 94
        %v493 = vpop.permute.xlu0 %492
        %494 = vrot.lane.b32.xlu0 %v410, 94
        %v495 = vpop.permute.xlu0 %494
        %496 = vrot.lane.b32.xlu0 0.0, 94
        %v497 = vpop.permute.xlu0 %496
        %vm498 = vcmask 769024
        %v499 = vsel %vm498, %v493, %v495
        %v500 = vsel %vm498, %v495, %v497
        %504 = vset.pattern.permute.xlu0 0
        %505 = vperm.xlu0 %504, %v306
        %v506 = vpop.permute.xlu0 %505
        %vm508 = vcmask 588800
        %v510 = vsel %vm508, %v411, 0
        %512 = vmatprep.subr.mxu0 %v410
        %513 = vmatpush1.msra.mxu0 %v409
        %514 = vmatprep.subr.mxu0 %v423
        %515 = vmatpush1.msra.mxu0 %v422
        %516 = vmatprep.subr.mxu0 %v434
        %517 = vmatpush1.msra.mxu0 %v433
        %518 = vmatprep.subr.mxu0 %v445
        %519 = vmatpush1.msra.mxu0 %v444
        %520 = vmatprep.subr.mxu0 %v456
        %521 = vmatpush1.msra.mxu0 %v455
        %522 = vmatprep.subr.mxu0 %v467
        %523 = vmatpush1.msra.mxu0 %v466
        %524 = vmatprep.subr.mxu0 %v478
        %525 = vmatpush1.msra.mxu0 %v477
        %526 = vmatprep.subr.mxu0 %v489
        %527 = vmatpush1.msra.mxu0 %v488
        %528 = vmatprep.subr.mxu0 %v500
        %529 = vmatpush1.msra.mxu0 %v499
        %530 = vmatprep.subr.mxu0 0.0
        %531 = vmatpush1.msra.mxu0 0.0
        %532 = vmatprep.subr.mxu0 0.0
        %533 = vmatpush1.msra.mxu0 0.0
        %534 = vmatprep.subr.mxu0 0.0
        %535 = vmatpush1.msra.mxu0 0.0
        %536 = vmatprep.subr.mxu0 0.0
        %537 = vmatpush1.msra.mxu0 0.0
        %538 = vmatprep.subr.mxu0 0.0
        %539 = vmatpush1.msra.mxu0 0.0
        %540 = vmatprep.subr.mxu0 0.0
        %541 = vmatpush1.msra.mxu0 0.0
        %542 = vmatprep.subr.mxu0 0.0
        %543 = vmatpush1.msra.mxu0 0.0
        %544 = vmatprep.subr.mxu0 0.0
        %545 = vmatpush1.msra.mxu0 0.0
        %546 = vmatprep.subr.mxu0 0.0
        %547 = vmatpush1.msra.mxu0 0.0
        %548 = vmatprep.subr.mxu0 0.0
        %549 = vmatpush1.msra.mxu0 0.0
        %550 = vmatprep.subr.mxu0 0.0
        %551 = vmatpush1.msra.mxu0 0.0
        %552 = vmatprep.subr.mxu0 0.0
        %553 = vmatpush1.msra.mxu0 0.0
        %554 = vmatprep.subr.mxu0 0.0
        %555 = vmatpush1.msra.mxu0 0.0
        %556 = vmatprep.subr.mxu0 0.0
        %557 = vmatpush1.msra.mxu0 0.0
        %558 = vmatprep.subr.mxu0 0.0
        %559 = vmatpush1.msra.mxu0 0.0
        %560 = vmatprep.subr.mxu0 0.0
        %561 = vmatpush1.msra.mxu0 0.0
        %562 = vmatprep.subr.mxu0 0.0
        %563 = vmatpush1.msra.mxu0 0.0
        %564 = vmatprep.subr.mxu0 0.0
        %565 = vmatpush1.msra.mxu0 0.0
        %566 = vmatprep.subr.mxu0 0.0
        %567 = vmatpush1.msra.mxu0 0.0
        %568 = vmatprep.subr.mxu0 0.0
        %569 = vmatpush1.msra.mxu0 0.0
        %570 = vmatprep.subr.mxu0 0.0
        %571 = vmatpush1.msra.mxu0 0.0
        %572 = vmatprep.subr.mxu0 0.0
        %573 = vmatpush1.msra.mxu0 0.0
        %574 = vmatprep.subr.mxu0 0.0
        %575 = vmatpush1.msra.mxu0 0.0
        %576 = vmatprep.mubr.f32.mxu0 0.0
        %577 = vmatmul.mubr.f32.gmra.mrb[0].mxu0 %v510
        %v578 = vpop.f32.mrb[0].mxu0
        %v579 = vadd.f32 %v506, %v578
        %v580 = vpop.f32.mrb[0].mxu0
        %v581 = vadd.f32 %v506, %v580
        %582 = vdwg.mxu0
        %v583 = vmax.f32 %v579, 0.0
        %v584 = vmax.f32 %v581, 0.0
        %v585 = vmin.f32 %v579, 0.0
        %v586 = vmin.f32 %v581, 0.0
        %v587 = vrot.slane %v309, 1
        %s588 = vtos %v587
        %v589 = vstv %s588
        %v591 = vmul.f32 %v589, %v585
        %v592 = vmul.f32 %v589, %v586
        %v593 = vadd.f32 %v583, %v591
        %v594 = vadd.f32 %v584, %v592
        %v596 = vlaneseq
        %v597 = vshrl.u32 %v596, 7
        %v598 = vsub.s32 0, %v597
        %v599 = vrot.slane %v310, %v598
        %v600 = vlaneseq
        %v601 = vshrl.u32 %v600, 7
        %v602 = vsub.s32 1, %v601
        %v603 = vrot.slane %v310, %v602
        %v606 = vmul.f32 %v593, %v599
        %v607 = vmul.f32 %v594, %v603
        %v608 = vld [vmem:[%s3] sm:$0xff]
        %611 = vrot.lane.b32.xlu0 %v606, 34
        %v612 = vpop.permute.xlu0 %611
        %613 = vrot.lane.b32.xlu0 %v607, 34
        %v614 = vpop.permute.xlu0 %613
        %vm615 = vcmask 277504
        %v616 = vsel %vm615, %v612, %v614
        %v618 = vsel %vm615, 0.0, %v612
        %620 = vrot.lane.b32.xlu0 %v618, 1
        %v621 = vpop.permute.xlu0 %620
        %622 = vrot.lane.b32.xlu0 %v616, 1
        %v623 = vpop.permute.xlu0 %622
        %624 = vrot.lane.b32.xlu0 %v614, 1
        %v625 = vpop.permute.xlu0 %624
        %vm626 = vcmask 7168
        %v627 = vsel %vm626, %v621, %v623
        %v628 = vsel %vm626, %v623, %v625
        %629 = vrot.lane.b32.xlu0 %v618, 2
        %v630 = vpop.permute.xlu0 %629
        %631 = vrot.lane.b32.xlu0 %v616, 2
        %v632 = vpop.permute.xlu0 %631
        %633 = vrot.lane.b32.xlu0 %v614, 2
        %v634 = vpop.permute.xlu0 %633
        %vm635 = vcmask 15360
        %v636 = vsel %vm635, %v630, %v632
        %v637 = vsel %vm635, %v632, %v634
        %638 = vrot.lane.b32.xlu0 %v618, 16
        %v639 = vpop.permute.xlu0 %638
        %640 = vrot.lane.b32.xlu0 %v616, 16
        %v641 = vpop.permute.xlu0 %640
        %642 = vrot.lane.b32.xlu0 %v614, 16
        %v643 = vpop.permute.xlu0 %642
        %vm644 = vcmask 130048
        %v645 = vsel %vm644, %v639, %v641
        %v646 = vsel %vm644, %v641, %v643
        %647 = vrot.lane.b32.xlu0 %v618, 17
        %v648 = vpop.permute.xlu0 %647
        %649 = vrot.lane.b32.xlu0 %v616, 17
        %v650 = vpop.permute.xlu0 %649
        %651 = vrot.lane.b32.xlu0 %v614, 17
        %v652 = vpop.permute.xlu0 %651
        %vm653 = vcmask 138240
        %v654 = vsel %vm653, %v648, %v650
        %v655 = vsel %vm653, %v650, %v652
        %656 = vrot.lane.b32.xlu0 %v618, 18
        %v657 = vpop.permute.xlu0 %656
        %658 = vrot.lane.b32.xlu0 %v616, 18
        %v659 = vpop.permute.xlu0 %658
        %660 = vrot.lane.b32.xlu0 %v614, 18
        %v661 = vpop.permute.xlu0 %660
        %vm662 = vcmask 146432
        %v663 = vsel %vm662, %v657, %v659
        %v664 = vsel %vm662, %v659, %v661
        %665 = vrot.lane.b32.xlu0 %v618, 32
        %v666 = vpop.permute.xlu0 %665
        %667 = vrot.lane.b32.xlu0 %v616, 32
        %v668 = vpop.permute.xlu0 %667
        %669 = vrot.lane.b32.xlu0 %v614, 32
        %v670 = vpop.permute.xlu0 %669
        %vm671 = vcmask 261120
        %v672 = vsel %vm671, %v666, %v668
        %v673 = vsel %vm671, %v668, %v670
        %674 = vrot.lane.b32.xlu0 %v618, 33
        %v675 = vpop.permute.xlu0 %674
        %676 = vrot.lane.b32.xlu0 %v616, 33
        %v677 = vpop.permute.xlu0 %676
        %678 = vrot.lane.b32.xlu0 %v614, 33
        %v679 = vpop.permute.xlu0 %678
        %vm680 = vcmask 269312
        %v681 = vsel %vm680, %v675, %v677
        %v682 = vsel %vm680, %v677, %v679
        %683 = vrot.lane.b32.xlu0 %v618, 34
        %v684 = vpop.permute.xlu0 %683
        %685 = vrot.lane.b32.xlu0 %v616, 34
        %v686 = vpop.permute.xlu0 %685
        %v687 = vsel %vm615, %v684, %v686
        %689 = vset.pattern.permute.xlu0 0
        %690 = vperm.xlu0 %689, %v307
        %v691 = vpop.permute.xlu0 %690
        %693 = vrot.lane.b32.xlu0 %v618, 94
        %v694 = vpop.permute.xlu0 %693
        %695 = vrot.lane.b32.xlu0 %v616, 94
        %v696 = vpop.permute.xlu0 %695
        %697 = vrot.lane.b32.xlu0 %v614, 94
        %v698 = vpop.permute.xlu0 %697
        %699 = vrot.lane.b32.xlu0 %v621, 94
        %v700 = vpop.permute.xlu0 %699
        %701 = vrot.lane.b32.xlu0 %v627, 94
        %v702 = vpop.permute.xlu0 %701
        %703 = vrot.lane.b32.xlu0 %v628, 94
        %v704 = vpop.permute.xlu0 %703
        %705 = vrot.lane.b32.xlu0 %v630, 94
        %v706 = vpop.permute.xlu0 %705
        %707 = vrot.lane.b32.xlu0 %v636, 94
        %v708 = vpop.permute.xlu0 %707
        %709 = vrot.lane.b32.xlu0 %v637, 94
        %v710 = vpop.permute.xlu0 %709
        %711 = vrot.lane.b32.xlu0 %v639, 94
        %v712 = vpop.permute.xlu0 %711
        %713 = vrot.lane.b32.xlu0 %v645, 94
        %v714 = vpop.permute.xlu0 %713
        %715 = vrot.lane.b32.xlu0 %v646, 94
        %v716 = vpop.permute.xlu0 %715
        %717 = vrot.lane.b32.xlu0 %v648, 94
        %v718 = vpop.permute.xlu0 %717
        %719 = vrot.lane.b32.xlu0 %v654, 94
        %v720 = vpop.permute.xlu0 %719
        %721 = vrot.lane.b32.xlu0 %v655, 94
        %v722 = vpop.permute.xlu0 %721
        %723 = vrot.lane.b32.xlu0 %v657, 94
        %v724 = vpop.permute.xlu0 %723
        %725 = vrot.lane.b32.xlu0 %v663, 94
        %v726 = vpop.permute.xlu0 %725
        %727 = vrot.lane.b32.xlu0 %v664, 94
        %v728 = vpop.permute.xlu0 %727
        %729 = vrot.lane.b32.xlu0 %v666, 94
        %v730 = vpop.permute.xlu0 %729
        %731 = vrot.lane.b32.xlu0 %v672, 94
        %v732 = vpop.permute.xlu0 %731
        %733 = vrot.lane.b32.xlu0 %v673, 94
        %v734 = vpop.permute.xlu0 %733
        %735 = vrot.lane.b32.xlu0 %v675, 94
        %v736 = vpop.permute.xlu0 %735
        %737 = vrot.lane.b32.xlu0 %v681, 94
        %v738 = vpop.permute.xlu0 %737
        %739 = vrot.lane.b32.xlu0 %v682, 94
        %v740 = vpop.permute.xlu0 %739
        %741 = vrot.lane.b32.xlu0 %v684, 94
        %v742 = vpop.permute.xlu0 %741
        %743 = vrot.lane.b32.xlu0 %v687, 94
        %v744 = vpop.permute.xlu0 %743
        %745 = vrot.lane.b32.xlu0 %v686, 94
        %v746 = vpop.permute.xlu0 %745
        %v747 = vsel %vm498, %v694, %v696
        %v748 = vsel %vm498, %v696, %v698
        %v749 = vsel %vm498, %v700, %v702
        %v750 = vsel %vm498, %v702, %v704
        %v751 = vsel %vm498, %v706, %v708
        %v752 = vsel %vm498, %v708, %v710
        %v753 = vsel %vm498, %v712, %v714
        %v754 = vsel %vm498, %v714, %v716
        %v755 = vsel %vm498, %v718, %v720
        %v756 = vsel %vm498, %v720, %v722
        %v757 = vsel %vm498, %v724, %v726
        %v758 = vsel %vm498, %v726, %v728
        %v759 = vsel %vm498, %v730, %v732
        %v760 = vsel %vm498, %v732, %v734
        %v761 = vsel %vm498, %v736, %v738
        %v762 = vsel %vm498, %v738, %v740
        %v763 = vsel %vm498, %v742, %v744
        %v764 = vsel %vm498, %v744, %v746
        %v784 = vsel %vm508, %v608, 0
        %786 = vmatprep.subr.mxu0 %v748
        %787 = vmatpush1.msra.mxu0 %v747
        %788 = vmatprep.subr.mxu0 %v750
        %789 = vmatpush1.msra.mxu0 %v749
        %790 = vmatprep.subr.mxu0 %v752
        %791 = vmatpush1.msra.mxu0 %v751
        %792 = vmatprep.subr.mxu0 %v754
        %793 = vmatpush1.msra.mxu0 %v753
        %794 = vmatprep.subr.mxu0 %v756
        %795 = vmatpush1.msra.mxu0 %v755
        %796 = vmatprep.subr.mxu0 %v758
        %797 = vmatpush1.msra.mxu0 %v757
        %798 = vmatprep.subr.mxu0 %v760
        %799 = vmatpush1.msra.mxu0 %v759
        %800 = vmatprep.subr.mxu0 %v762
        %801 = vmatpush1.msra.mxu0 %v761
        %802 = vmatprep.subr.mxu0 %v764
        %803 = vmatpush1.msra.mxu0 %v763
        %804 = vmatprep.subr.mxu0 0.0
        %805 = vmatpush1.msra.mxu0 0.0
        %806 = vmatprep.subr.mxu0 0.0
        %807 = vmatpush1.msra.mxu0 0.0
        %808 = vmatprep.subr.mxu0 0.0
        %809 = vmatpush1.msra.mxu0 0.0
        %810 = vmatprep.subr.mxu0 0.0
        %811 = vmatpush1.msra.mxu0 0.0
        %812 = vmatprep.subr.mxu0 0.0
        %813 = vmatpush1.msra.mxu0 0.0
        %814 = vmatprep.subr.mxu0 0.0
        %815 = vmatpush1.msra.mxu0 0.0
        %816 = vmatprep.subr.mxu0 0.0
        %817 = vmatpush1.msra.mxu0 0.0
        %818 = vmatprep.subr.mxu0 0.0
        %819 = vmatpush1.msra.mxu0 0.0
        %820 = vmatprep.subr.mxu0 0.0
        %821 = vmatpush1.msra.mxu0 0.0
        %822 = vmatprep.subr.mxu0 0.0
        %823 = vmatpush1.msra.mxu0 0.0
        %824 = vmatprep.subr.mxu0 0.0
        %825 = vmatpush1.msra.mxu0 0.0
        %826 = vmatprep.subr.mxu0 0.0
        %827 = vmatpush1.msra.mxu0 0.0
        %828 = vmatprep.subr.mxu0 0.0
        %829 = vmatpush1.msra.mxu0 0.0
        %830 = vmatprep.subr.mxu0 0.0
        %831 = vmatpush1.msra.mxu0 0.0
        %832 = vmatprep.subr.mxu0 0.0
        %833 = vmatpush1.msra.mxu0 0.0
        %834 = vmatprep.subr.mxu0 0.0
        %835 = vmatpush1.msra.mxu0 0.0
        %836 = vmatprep.subr.mxu0 0.0
        %837 = vmatpush1.msra.mxu0 0.0
        %838 = vmatprep.subr.mxu0 0.0
        %839 = vmatpush1.msra.mxu0 0.0
        %840 = vmatprep.subr.mxu0 0.0
        %841 = vmatpush1.msra.mxu0 0.0
        %842 = vmatprep.subr.mxu0 0.0
        %843 = vmatpush1.msra.mxu0 0.0
        %844 = vmatprep.subr.mxu0 0.0
        %845 = vmatpush1.msra.mxu0 0.0
        %846 = vmatprep.subr.mxu0 0.0
        %847 = vmatpush1.msra.mxu0 0.0
        %848 = vmatprep.subr.mxu0 0.0
        %849 = vmatpush1.msra.mxu0 0.0
        %850 = vmatprep.mubr.f32.mxu0 0.0
        %851 = vmatmul.mubr.f32.gmra.mrb[0].mxu0 %v784
        %v852 = vpop.f32.mrb[0].mxu0
        %v853 = vadd.f32 %v691, %v852
        %v854 = vpop.f32.mrb[0].mxu0
        %v855 = vadd.f32 %v691, %v854
        %856 = vdwg.mxu0
        %v857 = vmax.f32 %v853, 0.0
        %v858 = vmax.f32 %v855, 0.0
        %v859 = vmin.f32 %v853, 0.0
        %v860 = vmin.f32 %v855, 0.0
        %v861 = vrot.slane %v309, 2
        %s862 = vtos %v861
        %v863 = vstv %s862
        %v865 = vmul.f32 %v863, %v859
        %v866 = vmul.f32 %v863, %v860
        %v867 = vadd.f32 %v857, %v865
        %v868 = vadd.f32 %v858, %v866
        %v869 = vld [vmem:[%s4] sm:$0xff]
        %v870 = vsub.f32 %v867, %v409
        %v871 = vsub.f32 %v868, %v410
        %874 = vrot.lane.b32.xlu0 %v870, 127
        %v875 = vpop.permute.xlu0 %874
        %876 = vrot.lane.b32.xlu0 %v871, 127
        %v877 = vpop.permute.xlu0 %876
        %v878 = vsel %vm421, %v875, %v877
        %v879 = vsel %vm421, %v877, %v420
        %882 = vrot.lane.b32.xlu0 %v870, 126
        %v883 = vpop.permute.xlu0 %882
        %884 = vrot.lane.b32.xlu0 %v871, 126
        %v885 = vpop.permute.xlu0 %884
        %v886 = vsel %vm432, %v883, %v885
        %v887 = vsel %vm432, %v885, %v431
        %890 = vrot.lane.b32.xlu0 %v870, 112
        %v891 = vpop.permute.xlu0 %890
        %892 = vrot.lane.b32.xlu0 %v871, 112
        %v893 = vpop.permute.xlu0 %892
        %v894 = vsel %vm443, %v891, %v893
        %v895 = vsel %vm443, %v893, %v442
        %898 = vrot.lane.b32.xlu0 %v870, 111
        %v899 = vpop.permute.xlu0 %898
        %900 = vrot.lane.b32.xlu0 %v871, 111
        %v901 = vpop.permute.xlu0 %900
        %v902 = vsel %vm454, %v899, %v901
        %v903 = vsel %vm454, %v901, %v453
        %906 = vrot.lane.b32.xlu0 %v870, 110
        %v907 = vpop.permute.xlu0 %906
        %908 = vrot.lane.b32.xlu0 %v871, 110
        %v909 = vpop.permute.xlu0 %908
        %v910 = vsel %vm465, %v907, %v909
        %v911 = vsel %vm465, %v909, %v464
        %914 = vrot.lane.b32.xlu0 %v870, 96
        %v915 = vpop.permute.xlu0 %914
        %916 = vrot.lane.b32.xlu0 %v871, 96
        %v917 = vpop.permute.xlu0 %916
        %v918 = vsel %vm476, %v915, %v917
        %v919 = vsel %vm476, %v917, %v475
        %922 = vrot.lane.b32.xlu0 %v870, 95
        %v923 = vpop.permute.xlu0 %922
        %924 = vrot.lane.b32.xlu0 %v871, 95
        %v925 = vpop.permute.xlu0 %924
        %v926 = vsel %vm487, %v923, %v925
        %v927 = vsel %vm487, %v925, %v486
        %930 = vrot.lane.b32.xlu0 %v870, 94
        %v931 = vpop.permute.xlu0 %930
        %932 = vrot.lane.b32.xlu0 %v871, 94
        %v933 = vpop.permute.xlu0 %932
        %v934 = vsel %vm498, %v931, %v933
        %v935 = vsel %vm498, %v933, %v497
        %939 = vset.pattern.permute.xlu0 0
        %940 = vperm.xlu0 %939, %v308
        %v941 = vpop.permute.xlu0 %940
        %v944 = vsel %vm508, %v869, 0
        %946 = vmatprep.subr.mxu0 %v871
        %947 = vmatpush1.msra.mxu0 %v870
        %948 = vmatprep.subr.mxu0 %v879
        %949 = vmatpush1.msra.mxu0 %v878
        %950 = vmatprep.subr.mxu0 %v887
        %951 = vmatpush1.msra.mxu0 %v886
        %952 = vmatprep.subr.mxu0 %v895
        %953 = vmatpush1.msra.mxu0 %v894
        %954 = vmatprep.subr.mxu0 %v903
        %955 = vmatpush1.msra.mxu0 %v902
        %956 = vmatprep.subr.mxu0 %v911
        %957 = vmatpush1.msra.mxu0 %v910
        %958 = vmatprep.subr.mxu0 %v919
        %959 = vmatpush1.msra.mxu0 %v918
        %960 = vmatprep.subr.mxu0 %v927
        %961 = vmatpush1.msra.mxu0 %v926
        %962 = vmatprep.subr.mxu0 %v935
        %963 = vmatpush1.msra.mxu0 %v934
        %964 = vmatprep.subr.mxu0 0.0
        %965 = vmatpush1.msra.mxu0 0.0
        %966 = vmatprep.subr.mxu0 0.0
        %967 = vmatpush1.msra.mxu0 0.0
        %968 = vmatprep.subr.mxu0 0.0
        %969 = vmatpush1.msra.mxu0 0.0
        %970 = vmatprep.subr.mxu0 0.0
        %971 = vmatpush1.msra.mxu0 0.0
        %972 = vmatprep.subr.mxu0 0.0
        %973 = vmatpush1.msra.mxu0 0.0
        %974 = vmatprep.subr.mxu0 0.0
        %975 = vmatpush1.msra.mxu0 0.0
        %976 = vmatprep.subr.mxu0 0.0
        %977 = vmatpush1.msra.mxu0 0.0
        %978 = vmatprep.subr.mxu0 0.0
        %979 = vmatpush1.msra.mxu0 0.0
        %980 = vmatprep.subr.mxu0 0.0
        %981 = vmatpush1.msra.mxu0 0.0
        %982 = vmatprep.subr.mxu0 0.0
        %983 = vmatpush1.msra.mxu0 0.0
        %984 = vmatprep.subr.mxu0 0.0
        %985 = vmatpush1.msra.mxu0 0.0
        %986 = vmatprep.subr.mxu0 0.0
        %987 = vmatpush1.msra.mxu0 0.0
        %988 = vmatprep.subr.mxu0 0.0
        %989 = vmatpush1.msra.mxu0 0.0
        %990 = vmatprep.subr.mxu0 0.0
        %991 = vmatpush1.msra.mxu0 0.0
        %992 = vmatprep.subr.mxu0 0.0
        %993 = vmatpush1.msra.mxu0 0.0
        %994 = vmatprep.subr.mxu0 0.0
        %995 = vmatpush1.msra.mxu0 0.0
        %996 = vmatprep.subr.mxu0 0.0
        %997 = vmatpush1.msra.mxu0 0.0
        %998 = vmatprep.subr.mxu0 0.0
        %999 = vmatpush1.msra.mxu0 0.0
        %1000 = vmatprep.subr.mxu0 0.0
        %1001 = vmatpush1.msra.mxu0 0.0
        %1002 = vmatprep.subr.mxu0 0.0
        %1003 = vmatpush1.msra.mxu0 0.0
        %1004 = vmatprep.subr.mxu0 0.0
        %1005 = vmatpush1.msra.mxu0 0.0
        %1006 = vmatprep.subr.mxu0 0.0
        %1007 = vmatpush1.msra.mxu0 0.0
        %1008 = vmatprep.subr.mxu0 0.0
        %1009 = vmatpush1.msra.mxu0 0.0
        %1010 = vmatprep.mubr.f32.mxu0 0.0
        %1011 = vmatmul.mubr.f32.gmra.mrb[0].mxu0 %v944
        %v1012 = vpop.f32.mrb[0].mxu0
        %v1013 = vadd.f32 %v941, %v1012
        %v1014 = vpop.f32.mrb[0].mxu0
        %v1015 = vadd.f32 %v941, %v1014
        %1016 = vdwg.mxu0
        %v1017 = vmax.f32 %v1013, 0.0
        %v1018 = vmax.f32 %v1015, 0.0
        %v1019 = vmin.f32 %v1013, 0.0
        %v1020 = vmin.f32 %v1015, 0.0
        %v1021 = vrot.slane %v309, 3
        %s1022 = vtos %v1021
        %v1023 = vstv %s1022
        %v1025 = vmul.f32 %v1023, %v1019
        %v1026 = vmul.f32 %v1023, %v1020
        %v1027 = vadd.f32 %v1017, %v1025
        %v1028 = vadd.f32 %v1018, %v1026
        %v1029 = vadd.f32 %v1027, %v593
        %v1030 = vadd.f32 %v1028, %v594
        %1031 = vst [vmem:[%s298] sm:$0xff] %v1029
        %1032 = vst.msk [vmem:[%s298 + $0x8] sm:$0xff] %vm476, %v1030
        %s1033 = sand.u32 %s203, 1
        %s1034 = scalar_lea.sflag [#allocation3], %s1033
        %s1035 = sand.u32 %s203, 1
        %s1036 = smul.addr %s1035, 16
        %s1037 = scalar_lea.vmem [#allocation2], %s1036
        // Predicated region
        $region53: #{tpu_custom_call.1} parent=51 // pred_check
          %p1038 = pneg %p213
        $region54: #{tpu_custom_call.1} parent=51 // pred_check_branch
          %1040 = sbr.rel (%p1038) target = $region56
        $region55: #{tpu_custom_call.1} parent=51 // pred_region
          %s1042 = ssub.s32 256, 256
          %1043 = vsyncadd %s1034, %s1042
          %s1044 = smul.addr %s22, 2
          %s1045 = smul.addr %s1044, 128
          %s1046 = scalar_lea.hbm %s8, %s1045
          %s1048 = sshll.u32 %s1037, 4
          %s1049 = int_to_ptr.vmem [resolvable:$true] %s1048
          %1051 = dma.vmem_to_hbm [thread:$0]  %s1049, 256, %s1046, %s1034
        $region56: #{tpu_custom_call.1} parent=51 // pred_fallthru
          _
      $region52: #{tpu_custom_call.1} parent=5 // pred_fallthru
        _
      %p1052 = scmp.le.s32.totalorder 2, %s17
      // Predicated region
      $region57: #{tpu_custom_call.1} parent=5 // pred_check
        %p1053 = pneg %p1052
      $region58: #{tpu_custom_call.1} parent=5 // pred_check_branch
        %1055 = sbr.rel (%p1053) target = $region60
      $region59: #{tpu_custom_call.1} parent=5 // pred_region
        %s1056 = ssub.s32 %s17, 2
        // Predicated region
        $region61: #{tpu_custom_call.1} parent=59 // pred_check
          %p1057 = pneg %p219
        $region62: #{tpu_custom_call.1} parent=59 // pred_check_branch
          %1059 = sbr.rel (%p1057) target = $region64
        $region63: #{tpu_custom_call.1} parent=59 // pred_region
          %s1060 = sand.u32 %s204, 1
          %s1061 = scalar_lea.sflag [#allocation3], %s1060
          %s1062 = sand.u32 %s204, 1
          %s1063 = smul.addr %s1062, 16
          %s1064 = scalar_lea.vmem [#allocation2], %s1063
          %1065 = dma.done %s1061, 256
        $region64: #{tpu_custom_call.1} parent=59 // pred_fallthru
          _
      $region60: #{tpu_custom_call.1} parent=5 // pred_fallthru
        _
    $region6: #{tpu_custom_call.1} parent=1 // loop_footer
      %s21 = sadd.s32 1, %s17
    $region7: #{tpu_custom_call.1} parent=1 // loop_footer_branch
      %16 = sbr.rel target = $region3
    $region8: #{tpu_custom_call.1} parent=1 // loop_exit
      _
    %1066 = vsyncpa [#allocation3], 1
    %s1067 = scalar_lea.sflag [#allocation3], 1
    %1068 = vsyncpa %s1067, 1

</llo_original>
